<compile_context>
chip_gen: v6e
topology: v6e:2x2x1
jax: 0.10.0
libtpu: 0.0.40
codegen_flags: <defaults>
</compile_context>

<pallas_src>
import jax
import jax.numpy as jnp
from jax.experimental import pallas as pl
from jax.experimental.pallas import tpu as pltpu

_LANE = 128


def _round_up(x: int, m: int) -> int:
    return ((x + m - 1) // m) * m


def _sublane_multiple(dtype) -> int:
    return {4: 8, 2: 16, 1: 32}[jnp.dtype(dtype).itemsize]


def _vmem_limit(working_set_bytes: int) -> int:
    # working set + headroom, clamped to sane bounds.
    return int(min(128 << 20, max(16 << 20, working_set_bytes + (4 << 20))))


# --------------------------------------------------------------------------------------
# Kernel 1: fused Q/K/V projection   q|k|v = x @ [scale*Wq | Wk | Wv]   (tiled matmul)
# --------------------------------------------------------------------------------------
def _make_proj_kernel(dpad: int):
    def kernel(x_ref, w_ref, q_ref, k_ref, v_ref, acc_ref):
        kstep = pl.program_id(1)

        @pl.when(kstep == 0)
        def _init():
            acc_ref[...] = jnp.zeros_like(acc_ref)

        acc_ref[...] += jnp.dot(
            x_ref[...], w_ref[...], preferred_element_type=jnp.float32
        )

        @pl.when(kstep == pl.num_programs(1) - 1)
        def _finalize():
            acc = acc_ref[...]
            q_ref[...] = acc[:, :dpad].astype(q_ref.dtype)
            k_ref[...] = acc[:, dpad:2 * dpad].astype(k_ref.dtype)
            v_ref[...] = acc[:, 2 * dpad:].astype(v_ref.dtype)

    return kernel


# --------------------------------------------------------------------------------------
# Kernel 2: flash attention with online softmax over precomputed q/k/v tiles
# --------------------------------------------------------------------------------------
def _make_attn_kernel(needs_mask: bool, compute_dtype):
    def kernel(q_ref, k_ref, v_ref, *rest):
        if needs_mask:
            bias_ref, o_ref, m_sc, l_sc, acc_sc = rest
        else:
            o_ref, m_sc, l_sc, acc_sc = rest
        ki = pl.program_id(1)

        @pl.when(ki == 0)
        def _init():
            m_sc[...] = jnp.full_like(m_sc, -jnp.inf)
            l_sc[...] = jnp.zeros_like(l_sc)
            acc_sc[...] = jnp.zeros_like(acc_sc)

        # scores: contract last dims of q and k (scale already folded into W_q)
        s = jax.lax.dot_general(
            q_ref[...], k_ref[...], (((1,), (1,)), ((), ())),
            preferred_element_type=jnp.float32,
        )  # (blk, blk) f32
        if needs_mask:
            s = s + bias_ref[0]  # (1, blk) additive 0 / -inf bias, broadcast over rows

        m_prev = m_sc[...]
        m_new = jnp.maximum(m_prev, jnp.max(s, axis=-1, keepdims=True))
        alpha = jnp.exp(m_prev - m_new)
        p = jnp.exp(s - m_new)
        l_sc[...] = alpha * l_sc[...] + jnp.sum(p, axis=-1, keepdims=True)
        acc_sc[...] = alpha * acc_sc[...] + jnp.dot(
            p.astype(compute_dtype), v_ref[...], preferred_element_type=jnp.float32
        )
        m_sc[...] = m_new

        @pl.when(ki == pl.num_programs(1) - 1)
        def _finalize():
            inv_l = pl.reciprocal(l_sc[...], approx=True)
            o_ref[...] = (acc_sc[...] * inv_l).astype(o_ref.dtype)

    return kernel


# --------------------------------------------------------------------------------------
# Wrapper
# --------------------------------------------------------------------------------------
def self_attention_v2(x, w_query, w_key, w_value, *, mxu_dtype=None, block=256):
    """x: (seq, dim_in); w_*: PyTorch nn.Linear weights of shape (dim_out, dim_in).

    mxu_dtype: optional MXU operand dtype (jnp.bfloat16 recommended on v5e/v6e/v7x:
    halves HBM traffic and VMEM; softmax math and accumulation stay f32).
    Default (None) keeps x.dtype for exact f32 behaviour.
    """
    seq, dim_in = x.shape
    dim_out = w_query.shape[0]
    out_dtype = x.dtype
    compute_dtype = jnp.dtype(mxu_dtype) if mxu_dtype is not None else jnp.dtype(x.dtype)
    cd_size = compute_dtype.itemsize
    out_size = jnp.dtype(out_dtype).itemsize

    # ---- feature-dim padding / din tiling -------------------------------------------
    dpad = _round_up(dim_out, _LANE)          # TODO(synk): 256-align for v6e when dim_out>128
    din_128 = _round_up(dim_in, _LANE)
    if din_128 <= 512:
        tk = din_pad = din_128
    else:
        tk = 512
        din_pad = _round_up(dim_in, tk)
    n_k = din_pad // tk

    # ---- sequence tiling (dtype-packed sublane multiple, prefer n_q >= 2) -----------
    sub = _sublane_multiple(compute_dtype)
    blk = min(_round_up(block, sub), _round_up(seq, sub))
    s_pad = _round_up(seq, blk)
    if s_pad // blk < 2 and seq > sub:        # v7x: give both TensorCores a q tile
        blk_half = _round_up(-(-seq // 2), sub)
        if blk_half < blk:
            blk = blk_half
            s_pad = _round_up(seq, blk)
    n_q = n_kv = s_pad // blk
    needs_mask = seq < s_pad

    # ---- weight / input prep (one-time, tiny vs. the matmuls) -----------------------
    scale = 1.0 / (dim_out ** 0.5)
    xp = jnp.pad(x, ((0, s_pad - seq), (0, din_pad - dim_in))).astype(compute_dtype)

    def pad_w(w, s=1.0):
        wt = (w.T * s).astype(compute_dtype)
        return jnp.pad(wt, ((0, din_pad - dim_in), (0, dpad - dim_out)))

    w_all = jnp.concatenate(
        [pad_w(w_query, scale), pad_w(w_key), pad_w(w_value)], axis=1
    )  # (din_pad, 3*dpad)

    # ---- projection call: q|k|v = x @ w_all -----------------------------------------
    w_spec_kwargs = {}
    if n_k == 1:
        # Weight block index never changes -> single buffer halves its VMEM footprint.
        w_spec_kwargs = dict(pipeline_mode=pl.Buffered(buffer_count=1))

    proj_vmem = (
        2 * blk * tk * cd_size                               # x tiles (double-buffered)
        + (1 if n_k == 1 else 2) * tk * 3 * dpad * cd_size   # weight block(s)
        + 2 * 3 * blk * dpad * cd_size                       # q/k/v out tiles
        + blk * 3 * dpad * 4                                 # f32 accumulator
    )
    proj_cost = pl.CostEstimate(
        flops=int(2 * s_pad * din_pad * 3 * dpad),
        transcendentals=0,
        bytes_accessed=int(xp.size * cd_size + w_all.size * cd_size
                           + 3 * s_pad * dpad * cd_size),
    )

    q, k, v = pl.pallas_call(
        _make_proj_kernel(dpad),
        out_shape=tuple(
            jax.ShapeDtypeStruct((s_pad, dpad), compute_dtype) for _ in range(3)
        ),
        grid_spec=pltpu.PrefetchScalarGridSpec(
            num_scalar_prefetch=0,
            grid=(n_q, n_k),
            in_specs=[
                pl.BlockSpec((blk, tk), lambda i, j: (i, j)),
                pl.BlockSpec((tk, 3 * dpad), lambda i, j: (j, 0), **w_spec_kwargs),
            ],
            out_specs=[
                pl.BlockSpec((blk, dpad), lambda i, j: (i, 0)),
                pl.BlockSpec((blk, dpad), lambda i, j: (i, 0)),
                pl.BlockSpec((blk, dpad), lambda i, j: (i, 0)),
            ],
            scratch_shapes=[pltpu.VMEM((blk, 3 * dpad), jnp.float32)],
        ),
        compiler_params=pltpu.CompilerParams(
            dimension_semantics=("parallel", "arbitrary"),
            vmem_limit_bytes=_vmem_limit(proj_vmem),
        ),
        cost_estimate=proj_cost,
    )(xp, w_all)

    # ---- attention call: online softmax over (qi, ki) tiles --------------------------
    attn_inputs = [q, k, v]
    in_specs = [
        pl.BlockSpec((blk, dpad), lambda qi, ki: (qi, 0)),   # q tile
        pl.BlockSpec((blk, dpad), lambda qi, ki: (ki, 0)),   # k tile
        pl.BlockSpec((blk, dpad), lambda qi, ki: (ki, 0)),   # v tile
    ]
    if needs_mask:
        kv_idx = jnp.arange(s_pad)
        bias = jnp.where(kv_idx < seq, 0.0, -jnp.inf).astype(jnp.float32)
        attn_inputs.append(bias.reshape(n_kv, 1, blk))
        in_specs.append(pl.BlockSpec((1, 1, blk), lambda qi, ki: (ki, 0, 0)))

    attn_vmem = (
        2 * 3 * blk * dpad * cd_size          # q/k/v tiles (double-buffered)
        + 2 * blk * dpad * out_size           # output tile
        + blk * dpad * 4 + 4 * blk * 4        # acc + m/l scratch
        + (2 * blk * 4 if needs_mask else 0)  # bias tile
    )
    attn_cost = pl.CostEstimate(
        flops=int(4 * s_pad * s_pad * dpad),
        transcendentals=int(s_pad * s_pad),
        bytes_accessed=int(
            (1 + 2 * n_q) * s_pad * dpad * cd_size     # q once, k/v per q tile
            + s_pad * dpad * out_size
            + (n_q * s_pad * 4 if needs_mask else 0)
        ),
    )

    out_padded = pl.pallas_call(
        _make_attn_kernel(needs_mask, compute_dtype),
        out_shape=jax.ShapeDtypeStruct((s_pad, dpad), out_dtype),
        grid_spec=pltpu.PrefetchScalarGridSpec(
            num_scalar_prefetch=0,
            grid=(n_q, n_kv),
            in_specs=in_specs,
            out_specs=pl.BlockSpec((blk, dpad), lambda qi, ki: (qi, 0)),
            scratch_shapes=[
                pltpu.VMEM((blk, 1), jnp.float32),     # running max m
                pltpu.VMEM((blk, 1), jnp.float32),     # running sum l
                pltpu.VMEM((blk, dpad), jnp.float32),  # output accumulator
            ],
        ),
        compiler_params=pltpu.CompilerParams(
            dimension_semantics=("parallel", "arbitrary"),
            vmem_limit_bytes=_vmem_limit(attn_vmem),
        ),
        cost_estimate=attn_cost,
    )(*attn_inputs)

    return out_padded[:seq, :dim_out]


def _reference(x, w_query, w_key, w_value):
    q = x @ w_query.T
    k = x @ w_key.T
    v = x @ w_value.T
    scores = q @ k.T
    weights = jax.nn.softmax(scores / (k.shape[-1] ** 0.5), axis=-1)
    return weights @ v


if __name__ == "__main__":
    key = jax.random.PRNGKey(0)
    kx, kq, kk, kv, kx2 = jax.random.split(key, 5)

    # --- case 1: module-implied small shape, exact f32 path --------------------------
    seq, dim_in, dim_out = 8, 16, 32
    x = jax.random.normal(kx, (seq, dim_in), dtype=jnp.float32)
    bound = 1.0 / (dim_in ** 0.5)
    w_query = jax.random.uniform(kq, (dim_out, dim_in), jnp.float32, -bound, bound)
    w_key = jax.random.uniform(kk, (dim_out, dim_in), jnp.float32, -bound, bound)
    w_value = jax.random.uniform(kv, (dim_out, dim_in), jnp.float32, -bound, bound)

    out = jax.block_until_ready(self_attention_v2(x, w_query, w_key, w_value))
    ref = _reference(x, w_query, w_key, w_value)
    assert out.shape == (seq, dim_out)
    assert jnp.allclose(out, ref, atol=2e-3, rtol=2e-3), "f32 path mismatch vs reference"

    # --- case 2: multi-tile kv sweep + masked padded tail (online softmax path) ------
    seq2 = 20
    x2 = jax.random.normal(kx2, (seq2, dim_in), dtype=jnp.float32)
    out2 = jax.block_until_ready(
        self_attention_v2(x2, w_query, w_key, w_value, block=8)
    )
    ref2 = _reference(x2, w_query, w_key, w_value)
    assert out2.shape == (seq2, dim_out)
    assert jnp.allclose(out2, ref2, atol=2e-3, rtol=2e-3), "tiled path mismatch vs reference"

    # --- case 3: bf16 MXU operands (recommended fast path), f32 accumulation ---------
    out_bf16 = jax.block_until_ready(
        self_attention_v2(x, w_query, w_key, w_value, mxu_dtype=jnp.bfloat16)
    )
    assert jnp.allclose(out_bf16, ref, atol=5e-2, rtol=5e-2), "bf16 path mismatch vs reference"

    print("KERNEL_OK")
</pallas_src>

<mosaic_0001>
module attributes {stable_mosaic.version = 11 : i64} {
  func.func @kernel(%arg0: i32, %arg1: i32, %arg2: memref<8x128xf32, #tpu.memory_space<vmem>>, %arg3: memref<128x384xf32, #tpu.memory_space<vmem>>, %arg4: memref<8x128xf32, #tpu.memory_space<vmem>>, %arg5: memref<8x128xf32, #tpu.memory_space<vmem>>, %arg6: memref<8x128xf32, #tpu.memory_space<vmem>>, %arg7: memref<8x384xf32, #tpu.memory_space<vmem>>) attributes {dimension_semantics = [#tpu.dimension_semantics<parallel>, #tpu.dimension_semantics<arbitrary>], iteration_bounds = array<i64: 1, 1>, scalar_prefetch = 0 : i64, scratch_operands = 1 : i64, tpu.core_type = #tpu.core_type<tc>, window_params = [{transform_indices = @transform_0, window_bounds = array<i64: 8, 128>}, {pipeline_mode = #tpu.pipeline_mode<synchronous>, transform_indices = @transform_1, window_bounds = array<i64: 128, 384>}, {transform_indices = @transform_2, window_bounds = array<i64: 8, 128>}, {transform_indices = @transform_3, window_bounds = array<i64: 8, 128>}, {transform_indices = @transform_4, window_bounds = array<i64: 8, 128>}]} {
    %c0_i32 = arith.constant 0 : i32
    %0 = arith.cmpi eq, %arg1, %c0_i32 : i32
    %1 = arith.extui %0 : i1 to i32
    %c0_i32_0 = arith.constant 0 : i32
    %2 = arith.cmpi ne, %1, %c0_i32_0 : i32
    scf.if %2 {
      %cst_10 = arith.constant 0.000000e+00 : f32
      %12 = vector.broadcast %cst_10 : f32 to vector<8x384xf32>
      %c0_11 = arith.constant 0 : index
      %c0_12 = arith.constant 0 : index
      %13 = vector.load %arg7[%c0_11, %c0_12] : memref<8x384xf32, #tpu.memory_space<vmem>>, vector<8x384xf32>
      tpu.vector_store %arg7[%c0_11, %c0_12], %12 {strides = array<i32>} : memref<8x384xf32, #tpu.memory_space<vmem>>, vector<8x384xf32>,
    } else {
    }
    %c0 = arith.constant 0 : index
    %c0_1 = arith.constant 0 : index
    %3 = vector.load %arg7[%c0, %c0_1] : memref<8x384xf32, #tpu.memory_space<vmem>>, vector<8x384xf32>
    %c0_2 = arith.constant 0 : index
    %c0_3 = arith.constant 0 : index
    %4 = vector.load %arg2[%c0_2, %c0_3] : memref<8x128xf32, #tpu.memory_space<vmem>>, vector<8x128xf32>
    %c0_4 = arith.constant 0 : index
    %c0_5 = arith.constant 0 : index
    %5 = vector.load %arg3[%c0_4, %c0_5] : memref<128x384xf32, #tpu.memory_space<vmem>>, vector<128x384xf32>
    %cst = arith.constant dense<0.000000e+00> : vector<8x384xf32>
    %6 = tpu.matmul %4, %5, %cst {dimension_numbers = #tpu.dot_dimension_numbers<[1], [0], [0], [1], [0, 0, 1, 1], [], []>} : vector<8x128xf32>, vector<128x384xf32>, vector<8x384xf32> -> vector<8x384xf32>
    %7 = arith.addf %3, %6 : vector<8x384xf32>
    %c0_6 = arith.constant 0 : index
    %c0_7 = arith.constant 0 : index
    %8 = vector.load %arg7[%c0_6, %c0_7] : memref<8x384xf32, #tpu.memory_space<vmem>>, vector<8x384xf32>
    tpu.vector_store %arg7[%c0_6, %c0_7], %7 {strides = array<i32>} : memref<8x384xf32, #tpu.memory_space<vmem>>, vector<8x384xf32>,
    %c0_i32_8 = arith.constant 0 : i32
    %9 = arith.cmpi eq, %arg1, %c0_i32_8 : i32
    %10 = arith.extui %9 : i1 to i32
    %c0_i32_9 = arith.constant 0 : i32
    %11 = arith.cmpi ne, %10, %c0_i32_9 : i32
    scf.if %11 {
      %c0_10 = arith.constant 0 : index
      %c0_11 = arith.constant 0 : index
      %12 = vector.load %arg7[%c0_10, %c0_11] : memref<8x384xf32, #tpu.memory_space<vmem>>, vector<8x384xf32>
      %13 = vector.extract_strided_slice %12 {offsets = [0, 0], sizes = [8, 128], strides = [1, 1]} : vector<8x384xf32> to vector<8x128xf32>
      %c0_12 = arith.constant 0 : index
      %c0_13 = arith.constant 0 : index
      %14 = vector.load %arg4[%c0_12, %c0_13] : memref<8x128xf32, #tpu.memory_space<vmem>>, vector<8x128xf32>
      tpu.vector_store %arg4[%c0_12, %c0_13], %13 {strides = array<i32>} : memref<8x128xf32, #tpu.memory_space<vmem>>, vector<8x128xf32>,
      %15 = vector.extract_strided_slice %12 {offsets = [0, 128], sizes = [8, 128], strides = [1, 1]} : vector<8x384xf32> to vector<8x128xf32>
      %c0_14 = arith.constant 0 : index
      %c0_15 = arith.constant 0 : index
      %16 = vector.load %arg5[%c0_14, %c0_15] : memref<8x128xf32, #tpu.memory_space<vmem>>, vector<8x128xf32>
      tpu.vector_store %arg5[%c0_14, %c0_15], %15 {strides = array<i32>} : memref<8x128xf32, #tpu.memory_space<vmem>>, vector<8x128xf32>,
      %17 = vector.extract_strided_slice %12 {offsets = [0, 256], sizes = [8, 128], strides = [1, 1]} : vector<8x384xf32> to vector<8x128xf32>
      %c0_16 = arith.constant 0 : index
      %c0_17 = arith.constant 0 : index
      %18 = vector.load %arg6[%c0_16, %c0_17] : memref<8x128xf32, #tpu.memory_space<vmem>>, vector<8x128xf32>
      tpu.vector_store %arg6[%c0_16, %c0_17], %17 {strides = array<i32>} : memref<8x128xf32, #tpu.memory_space<vmem>>, vector<8x128xf32>,
    } else {
    }
    return
  }
  func.func @transform_0(%arg0: i32, %arg1: i32) -> (i32, i32) {
    %c0_i32 = arith.constant 0 : i32
    return %arg0, %arg1 : i32, i32
  }
  func.func @transform_1(%arg0: i32, %arg1: i32) -> (i32, i32) {
    %c0_i32 = arith.constant 0 : i32
    %c0_i32_0 = arith.constant 0 : i32
    return %arg1, %c0_i32 : i32, i32
  }
  func.func @transform_2(%arg0: i32, %arg1: i32) -> (i32, i32) {
    %c0_i32 = arith.constant 0 : i32
    %c0_i32_0 = arith.constant 0 : i32
    return %arg0, %c0_i32 : i32, i32
  }
  func.func @transform_3(%arg0: i32, %arg1: i32) -> (i32, i32) {
    %c0_i32 = arith.constant 0 : i32
    %c0_i32_0 = arith.constant 0 : i32
    return %arg0, %c0_i32 : i32, i32
  }
  func.func @transform_4(%arg0: i32, %arg1: i32) -> (i32, i32) {
    %c0_i32 = arith.constant 0 : i32
    %c0_i32_0 = arith.constant 0 : i32
    return %arg0, %c0_i32 : i32, i32
  }
}

</mosaic_0001>

<llo_original>
// kernel: tpu_custom_call.1
$region0: #{tpu_custom_call.1}
  #allocation0 [shape = 'u32[]', space=smem, size = 0x4, offset = 0x4, fixed_abs, tag = 'smem constant byte address 0x4 - core index']
  #allocation1 [shape = 'u32[144,128]{1,0:T(1,128)}', space=vmem, size = 0x12000, scoped, tag = 'internal scratch']
  #allocation2 [shape = 'f32[8,384]{1,0:T(8,128)}', space=vmem, size = 0x3000, scoped, tag = 'scratch operand']
  %s0 = inlined_call_operand.hbm [shape: f32[8,128], index: 0, kind: input, shape index: {}]
  %s1 = inlined_call_operand.hbm [shape: f32[128,384], index: 1, kind: input, shape index: {}]
  %s2 = inlined_call_operand.hbm [shape: f32[8,128], index: 2, kind: output, shape index: {0}]
  %s3 = inlined_call_operand.hbm [shape: f32[8,128], index: 3, kind: output, shape index: {1}]
  %s4 = inlined_call_operand.hbm [shape: f32[8,128], index: 4, kind: output, shape index: {2}]
  %5 = xla_tuple %s2, %s3, %s4
  %s6 = sld [smem:[#allocation0]]
  $region50: #{tpu_custom_call.1} parent=0
    _
  %s8 = ssub.s32 1, %s6
  %s9 = scalar_select 0, %s8, %s6
  $region1: #{tpu_custom_call.1} parent=0
    #allocation3 [shape = 'u8[4096]{0}', space=vmem, size = 0x1000, scoped, tag = 'input window, operand 0, single buffered']
    #allocation4 [shape = 's32[1]{0}', space=sflag, size = 0x4, scoped, tag = 'scoped memory for tpu_custom_call.1']
    #allocation5 [shape = 's32[1]{0}', space=sflag, size = 0x4, scoped, tag = 'scoped memory for tpu_custom_call.1']
    #allocation6 [shape = 'u8[196608]{0}', space=vmem, size = 0x30000, scoped, tag = 'input window, operand 1, single buffered']
    #allocation7 [shape = 's32[1]{0}', space=sflag, size = 0x4, scoped, tag = 'scoped memory for tpu_custom_call.1']
    #allocation8 [shape = 'u8[4096]{0}', space=vmem, size = 0x1000, scoped, tag = 'output window, operand 0, single buffered']
    #allocation9 [shape = 'u8[4096]{0}', space=vmem, size = 0x1000, scoped, tag = 'output window, operand 1, single buffered']
    #allocation10 [shape = 's32[1]{0}', space=sflag, size = 0x4, scoped, tag = 'scoped memory for tpu_custom_call.1']
    #allocation11 [shape = 'u8[4096]{0}', space=vmem, size = 0x1000, scoped, tag = 'output window, operand 2, single buffered']
    %10 = vsyncpa [#allocation4], 0
    %11 = vsyncpa [#allocation7], 0
    %12 = vsyncpa [#allocation5], 0
    %13 = vsyncpa [#allocation10], 0
    // Predicated region
    $region2: #{tpu_custom_call.1} parent=1 // pred_check
      _
    $region3: #{tpu_custom_call.1} parent=1 // pred_check_branch
      %15 = sbr.rel (0) target = $region5
    $region4: #{tpu_custom_call.1} parent=1 // pred_region
      %s17 = ssub.s32 128, 128
      %18 = vsyncadd [#allocation4], %s17
      %s20 = sshll.u32 [#allocation3], 4
      %s21 = int_to_ptr.vmem [resolvable:$true] %s20
      %23 = dma.hbm_to_vmem [thread:$0]  %s0, 128, %s21, [#allocation4]
    $region5: #{tpu_custom_call.1} parent=1 // pred_fallthru
      _
    // Predicated region
    $region6: #{tpu_custom_call.1} parent=1 // pred_check
      _
    $region7: #{tpu_custom_call.1} parent=1 // pred_check_branch
      %25 = sbr.rel (0) target = $region9
    $region8: #{tpu_custom_call.1} parent=1 // pred_region
      %s27 = ssub.s32 6144, 6144
      %28 = vsyncadd [#allocation7], %s27
      %s29 = sshll.u32 [#allocation6], 4
      %s30 = int_to_ptr.vmem [resolvable:$true] %s29
      %35 = dma.hbm_to_vmem [thread:$0]  %s1, 6144, %s30, [#allocation7], 384, 384, 24
    $region9: #{tpu_custom_call.1} parent=1 // pred_fallthru
      _
    // Predicated region
    $region10: #{tpu_custom_call.1} parent=1 // pred_check
      _
    $region11: #{tpu_custom_call.1} parent=1 // pred_check_branch
      %37 = sbr.rel (0) target = $region13
    $region12: #{tpu_custom_call.1} parent=1 // pred_region
      %38 = dma.done [#allocation4], 128
    $region13: #{tpu_custom_call.1} parent=1 // pred_fallthru
      _
    // Predicated region
    $region14: #{tpu_custom_call.1} parent=1 // pred_check
      _
    $region15: #{tpu_custom_call.1} parent=1 // pred_check_branch
      %40 = sbr.rel (0) target = $region17
    $region16: #{tpu_custom_call.1} parent=1 // pred_region
      %41 = dma.done [#allocation7], 6144
    $region17: #{tpu_custom_call.1} parent=1 // pred_fallthru
      _
    %p42 = scmp.eq.s32.totalorder 0, 0
    // Predicated region
    $region18: #{tpu_custom_call.1} parent=1 // pred_check
      %p43 = pneg %p42
    $region19: #{tpu_custom_call.1} parent=1 // pred_check_branch
      %45 = sbr.rel (%p43) target = $region21
    $region20: #{tpu_custom_call.1} parent=1 // pred_region
      %46 = vst [vmem:[#allocation2] sm:$0xff] 0.0
      %47 = vst [vmem:[#allocation2 + $0x8] sm:$0xff] 0.0
      %48 = vst [vmem:[#allocation2 + $0x10] sm:$0xff] 0.0
    $region21: #{tpu_custom_call.1} parent=1 // pred_fallthru
      _
    %v49 = vld [vmem:[#allocation2] sm:$0xff]
    %v50 = vld [vmem:[#allocation2 + $0x8] sm:$0xff]
    %v51 = vld [vmem:[#allocation2 + $0x10] sm:$0xff]
    %v52 = vld [vmem:[#allocation3] sm:$0xff]
    %v53 = vld [vmem:[#allocation6] sm:$0xff]
    %v54 = vld [vmem:[#allocation6 + $0x8] sm:$0xff]
    %v55 = vld [vmem:[#allocation6 + $0x10] sm:$0xff]
    %v56 = vld [vmem:[#allocation6 + $0x18] sm:$0xff]
    %v57 = vld [vmem:[#allocation6 + $0x20] sm:$0xff]
    %v58 = vld [vmem:[#allocation6 + $0x28] sm:$0xff]
    %v59 = vld [vmem:[#allocation6 + $0x30] sm:$0xff]
    %v60 = vld [vmem:[#allocation6 + $0x38] sm:$0xff]
    %v61 = vld [vmem:[#allocation6 + $0x40] sm:$0xff]
    %v62 = vld [vmem:[#allocation6 + $0x48] sm:$0xff]
    %v63 = vld [vmem:[#allocation6 + $0x50] sm:$0xff]
    %v64 = vld [vmem:[#allocation6 + $0x58] sm:$0xff]
    %v65 = vld [vmem:[#allocation6 + $0x60] sm:$0xff]
    %v66 = vld [vmem:[#allocation6 + $0x68] sm:$0xff]
    %v67 = vld [vmem:[#allocation6 + $0x70] sm:$0xff]
    %v68 = vld [vmem:[#allocation6 + $0x78] sm:$0xff]
    %v69 = vld [vmem:[#allocation6 + $0x80] sm:$0xff]
    %v70 = vld [vmem:[#allocation6 + $0x88] sm:$0xff]
    %v71 = vld [vmem:[#allocation6 + $0x90] sm:$0xff]
    %v72 = vld [vmem:[#allocation6 + $0x98] sm:$0xff]
    %v73 = vld [vmem:[#allocation6 + $0xa0] sm:$0xff]
    %v74 = vld [vmem:[#allocation6 + $0xa8] sm:$0xff]
    %v75 = vld [vmem:[#allocation6 + $0xb0] sm:$0xff]
    %v76 = vld [vmem:[#allocation6 + $0xb8] sm:$0xff]
    %v77 = vld [vmem:[#allocation6 + $0xc0] sm:$0xff]
    %v78 = vld [vmem:[#allocation6 + $0xc8] sm:$0xff]
    %v79 = vld [vmem:[#allocation6 + $0xd0] sm:$0xff]
    %v80 = vld [vmem:[#allocation6 + $0xd8] sm:$0xff]
    %v81 = vld [vmem:[#allocation6 + $0xe0] sm:$0xff]
    %v82 = vld [vmem:[#allocation6 + $0xe8] sm:$0xff]
    %v83 = vld [vmem:[#allocation6 + $0xf0] sm:$0xff]
    %v84 = vld [vmem:[#allocation6 + $0xf8] sm:$0xff]
    %v85 = vld [vmem:[#allocation6 + $0x100] sm:$0xff]
    %v86 = vld [vmem:[#allocation6 + $0x108] sm:$0xff]
    %v87 = vld [vmem:[#allocation6 + $0x110] sm:$0xff]
    %v88 = vld [vmem:[#allocation6 + $0x118] sm:$0xff]
    %v89 = vld [vmem:[#allocation6 + $0x120] sm:$0xff]
    %v90 = vld [vmem:[#allocation6 + $0x128] sm:$0xff]
    %v91 = vld [vmem:[#allocation6 + $0x130] sm:$0xff]
    %v92 = vld [vmem:[#allocation6 + $0x138] sm:$0xff]
    %v93 = vld [vmem:[#allocation6 + $0x140] sm:$0xff]
    %v94 = vld [vmem:[#allocation6 + $0x148] sm:$0xff]
    %v95 = vld [vmem:[#allocation6 + $0x150] sm:$0xff]
    %v96 = vld [vmem:[#allocation6 + $0x158] sm:$0xff]
    %v97 = vld [vmem:[#allocation6 + $0x160] sm:$0xff]
    %v98 = vld [vmem:[#allocation6 + $0x168] sm:$0xff]
    %v99 = vld [vmem:[#allocation6 + $0x170] sm:$0xff]
    %v100 = vld [vmem:[#allocation6 + $0x178] sm:$0xff]
    %101 = vmatprep.subr.mxu0 %v99
    %102 = vmatpush1.msra.mxu0 %v98
    %103 = vmatprep.subr.mxu0 %v96
    %104 = vmatpush1.msra.mxu0 %v95
    %105 = vmatprep.subr.mxu0 %v93
    %106 = vmatpush1.msra.mxu0 %v92
    %107 = vmatprep.subr.mxu0 %v90
    %108 = vmatpush1.msra.mxu0 %v89
    %109 = vmatprep.subr.mxu0 %v87
    %110 = vmatpush1.msra.mxu0 %v86
    %111 = vmatprep.subr.mxu0 %v84
    %112 = vmatpush1.msra.mxu0 %v83
    %113 = vmatprep.subr.mxu0 %v81
    %114 = vmatpush1.msra.mxu0 %v80
    %115 = vmatprep.subr.mxu0 %v78
    %116 = vmatpush1.msra.mxu0 %v77
    %117 = vmatprep.subr.mxu0 %v75
    %118 = vmatpush1.msra.mxu0 %v74
    %119 = vmatprep.subr.mxu0 %v72
    %120 = vmatpush1.msra.mxu0 %v71
    %121 = vmatprep.subr.mxu0 %v69
    %122 = vmatpush1.msra.mxu0 %v68
    %123 = vmatprep.subr.mxu0 %v66
    %124 = vmatpush1.msra.mxu0 %v65
    %125 = vmatprep.subr.mxu0 %v63
    %126 = vmatpush1.msra.mxu0 %v62
    %127 = vmatprep.subr.mxu0 %v60
    %128 = vmatpush1.msra.mxu0 %v59
    %129 = vmatprep.subr.mxu0 %v57
    %130 = vmatpush1.msra.mxu0 %v56
    %131 = vmatprep.subr.mxu0 %v54
    %132 = vmatpush1.msra.mxu0 %v53
    %133 = vmatprep.subr.mxu0 0.0
    %134 = vmatpush2.msra.mxu0 0.0
    %135 = vmatprep.subr.mxu0 0.0
    %136 = vmatpush2.msra.mxu0 0.0
    %137 = vmatprep.subr.mxu0 0.0
    %138 = vmatpush2.msra.mxu0 0.0
    %139 = vmatprep.subr.mxu0 0.0
    %140 = vmatpush2.msra.mxu0 0.0
    %141 = vmatprep.subr.mxu0 0.0
    %142 = vmatpush2.msra.mxu0 0.0
    %143 = vmatprep.subr.mxu0 0.0
    %144 = vmatpush2.msra.mxu0 0.0
    %145 = vmatprep.subr.mxu0 0.0
    %146 = vmatpush2.msra.mxu0 0.0
    %147 = vmatprep.subr.mxu0 0.0
    %148 = vmatpush2.msra.mxu0 0.0
    %149 = vmatprep.subr.mxu0 0.0
    %150 = vmatpush2.msra.mxu0 0.0
    %151 = vmatprep.subr.mxu0 0.0
    %152 = vmatpush2.msra.mxu0 0.0
    %153 = vmatprep.subr.mxu0 0.0
    %154 = vmatpush2.msra.mxu0 0.0
    %155 = vmatprep.subr.mxu0 0.0
    %156 = vmatpush2.msra.mxu0 0.0
    %157 = vmatprep.subr.mxu0 0.0
    %158 = vmatpush2.msra.mxu0 0.0
    %159 = vmatprep.subr.mxu0 0.0
    %160 = vmatpush2.msra.mxu0 0.0
    %161 = vmatprep.subr.mxu0 0.0
    %162 = vmatpush2.msra.mxu0 0.0
    %163 = vmatprep.subr.mxu0 0.0
    %164 = vmatpush2.msra.mxu0 0.0
    %165 = vmatprep.mubr.f32.mxu0 0.0
    %166 = vmatmul.mubr.f32.gmra.mxu0 %v52
    %v167 = vpop.f32.mrf.mxu0
    %v168 = vadd.f32 0.0, %v167
    %v169 = vpop.f32.mrf.mxu0
    %v170 = vadd.f32 0.0, %v169
    %171 = vdwg.mxu0
    %172 = vmatprep.subr.mxu0 0.0
    %173 = vmatpush1.msra.mxu0 %v100
    %174 = vmatprep.subr.mxu0 0.0
    %175 = vmatpush1.msra.mxu0 %v97
    %176 = vmatprep.subr.mxu0 0.0
    %177 = vmatpush1.msra.mxu0 %v94
    %178 = vmatprep.subr.mxu0 0.0
    %179 = vmatpush1.msra.mxu0 %v91
    %180 = vmatprep.subr.mxu0 0.0
    %181 = vmatpush1.msra.mxu0 %v88
    %182 = vmatprep.subr.mxu0 0.0
    %183 = vmatpush1.msra.mxu0 %v85
    %184 = vmatprep.subr.mxu0 0.0
    %185 = vmatpush1.msra.mxu0 %v82
    %186 = vmatprep.subr.mxu0 0.0
    %187 = vmatpush1.msra.mxu0 %v79
    %188 = vmatprep.subr.mxu0 0.0
    %189 = vmatpush1.msra.mxu0 %v76
    %190 = vmatprep.subr.mxu0 0.0
    %191 = vmatpush1.msra.mxu0 %v73
    %192 = vmatprep.subr.mxu0 0.0
    %193 = vmatpush1.msra.mxu0 %v70
    %194 = vmatprep.subr.mxu0 0.0
    %195 = vmatpush1.msra.mxu0 %v67
    %196 = vmatprep.subr.mxu0 0.0
    %197 = vmatpush1.msra.mxu0 %v64
    %198 = vmatprep.subr.mxu0 0.0
    %199 = vmatpush1.msra.mxu0 %v61
    %200 = vmatprep.subr.mxu0 0.0
    %201 = vmatpush1.msra.mxu0 %v58
    %202 = vmatprep.subr.mxu0 0.0
    %203 = vmatpush1.msra.mxu0 %v55
    %204 = vmatprep.subr.mxu0 0.0
    %205 = vmatpush2.msra.mxu0 0.0
    %206 = vmatprep.subr.mxu0 0.0
    %207 = vmatpush2.msra.mxu0 0.0
    %208 = vmatprep.subr.mxu0 0.0
    %209 = vmatpush2.msra.mxu0 0.0
    %210 = vmatprep.subr.mxu0 0.0
    %211 = vmatpush2.msra.mxu0 0.0
    %212 = vmatprep.subr.mxu0 0.0
    %213 = vmatpush2.msra.mxu0 0.0
    %214 = vmatprep.subr.mxu0 0.0
    %215 = vmatpush2.msra.mxu0 0.0
    %216 = vmatprep.subr.mxu0 0.0
    %217 = vmatpush2.msra.mxu0 0.0
    %218 = vmatprep.subr.mxu0 0.0
    %219 = vmatpush2.msra.mxu0 0.0
    %220 = vmatprep.subr.mxu0 0.0
    %221 = vmatpush2.msra.mxu0 0.0
    %222 = vmatprep.subr.mxu0 0.0
    %223 = vmatpush2.msra.mxu0 0.0
    %224 = vmatprep.subr.mxu0 0.0
    %225 = vmatpush2.msra.mxu0 0.0
    %226 = vmatprep.subr.mxu0 0.0
    %227 = vmatpush2.msra.mxu0 0.0
    %228 = vmatprep.subr.mxu0 0.0
    %229 = vmatpush2.msra.mxu0 0.0
    %230 = vmatprep.subr.mxu0 0.0
    %231 = vmatpush2.msra.mxu0 0.0
    %232 = vmatprep.subr.mxu0 0.0
    %233 = vmatpush2.msra.mxu0 0.0
    %234 = vmatprep.subr.mxu0 0.0
    %235 = vmatpush2.msra.mxu0 0.0
    %236 = vmatprep.mubr.f32.mxu0 0.0
    %237 = vmatmul.mubr.f32.gmra.mxu0 %v52
    %v238 = vpop.f32.mrf.mxu0
    %v239 = vadd.f32 0.0, %v238
    %v240 = vpop.f32.mrf.mxu0
    %241 = vdwg.mxu0
    %v242 = vadd.f32 %v49, %v168
    %v243 = vadd.f32 %v50, %v170
    %v244 = vadd.f32 %v51, %v239
    %245 = vst [vmem:[#allocation2] sm:$0xff] %v242
    %246 = vst [vmem:[#allocation2 + $0x8] sm:$0xff] %v243
    %247 = vst [vmem:[#allocation2 + $0x10] sm:$0xff] %v244
    // Predicated region
    $region22: #{tpu_custom_call.1} parent=1 // pred_check
      %p248 = pneg %p42
    $region23: #{tpu_custom_call.1} parent=1 // pred_check_branch
      %250 = sbr.rel (%p248) target = $region25
    $region24: #{tpu_custom_call.1} parent=1 // pred_region
      %v251 = vld [vmem:[#allocation2] sm:$0xff]
      %v252 = vld [vmem:[#allocation2 + $0x8] sm:$0xff]
      %v253 = vld [vmem:[#allocation2 + $0x10] sm:$0xff]
      %254 = vst [vmem:[#allocation8] sm:$0xff] %v251
      %255 = vst [vmem:[#allocation9] sm:$0xff] %v252
      %256 = vst [vmem:[#allocation11] sm:$0xff] %v253
    $region25: #{tpu_custom_call.1} parent=1 // pred_fallthru
      _
    // Predicated region
    $region26: #{tpu_custom_call.1} parent=1 // pred_check
      _
    $region27: #{tpu_custom_call.1} parent=1 // pred_check_branch
      %258 = sbr.rel (0) target = $region29
    $region28: #{tpu_custom_call.1} parent=1 // pred_region
      %s260 = ssub.s32 128, 128
      %261 = vsyncadd [#allocation5], %s260
      %s263 = sshll.u32 [#allocation8], 4
      %s264 = int_to_ptr.vmem [resolvable:$true] %s263
      %266 = dma.vmem_to_hbm [thread:$0]  %s264, 128, %s2, [#allocation5]
    $region29: #{tpu_custom_call.1} parent=1 // pred_fallthru
      _
    // Predicated region
    $region30: #{tpu_custom_call.1} parent=1 // pred_check
      _
    $region31: #{tpu_custom_call.1} parent=1 // pred_check_branch
      %268 = sbr.rel (0) target = $region33
    $region32: #{tpu_custom_call.1} parent=1 // pred_region
      %s270 = ssub.s32 128, 128
      %271 = vsyncadd [#allocation10], %s270
      %s273 = sshll.u32 [#allocation9], 4
      %s274 = int_to_ptr.vmem [resolvable:$true] %s273
      %276 = dma.vmem_to_hbm [thread:$0]  %s274, 128, %s3, [#allocation10]
    $region33: #{tpu_custom_call.1} parent=1 // pred_fallthru
      _
    // Predicated region
    $region34: #{tpu_custom_call.1} parent=1 // pred_check
      _
    $region35: #{tpu_custom_call.1} parent=1 // pred_check_branch
      %278 = sbr.rel (0) target = $region37
    $region36: #{tpu_custom_call.1} parent=1 // pred_region
      %s280 = ssub.s32 128, 128
      %281 = vsyncadd [#allocation10], %s280
      %s283 = sshll.u32 [#allocation11], 4
      %s284 = int_to_ptr.vmem [resolvable:$true] %s283
      %286 = dma.vmem_to_hbm [thread:$0]  %s284, 128, %s4, [#allocation10]
    $region37: #{tpu_custom_call.1} parent=1 // pred_fallthru
      _
    // Predicated region
    $region38: #{tpu_custom_call.1} parent=1 // pred_check
      _
    $region39: #{tpu_custom_call.1} parent=1 // pred_check_branch
      %288 = sbr.rel (0) target = $region41
    $region40: #{tpu_custom_call.1} parent=1 // pred_region
      %289 = dma.done [#allocation5], 128
    $region41: #{tpu_custom_call.1} parent=1 // pred_fallthru
      _
    // Predicated region
    $region42: #{tpu_custom_call.1} parent=1 // pred_check
      _
    $region43: #{tpu_custom_call.1} parent=1 // pred_check_branch
      %291 = sbr.rel (0) target = $region45
    $region44: #{tpu_custom_call.1} parent=1 // pred_region
      %292 = dma.done [#allocation10], 128
    $region45: #{tpu_custom_call.1} parent=1 // pred_fallthru
      _
    // Predicated region
    $region46: #{tpu_custom_call.1} parent=1 // pred_check
      _
    $region47: #{tpu_custom_call.1} parent=1 // pred_check_branch
      %294 = sbr.rel (0) target = $region49
    $region48: #{tpu_custom_call.1} parent=1 // pred_region
      %295 = dma.done [#allocation10], 128
    $region49: #{tpu_custom_call.1} parent=1 // pred_fallthru
      _
    %296 = vsyncpa [#allocation4], 1
    %297 = vsyncpa [#allocation7], 1
    %298 = vsyncpa [#allocation5], 1
    %299 = vsyncpa [#allocation10], 1

</llo_original>
